<compile_context>
chip_gen: v7x
topology: tpu7x:2x2x1
jax: 0.10.0
libtpu: 0.0.40
codegen_flags: <defaults>
</compile_context>

<pallas_src>
import jax
import jax.numpy as jnp
from jax.experimental import pallas as pl
from jax.experimental.pallas import tpu as pltpu


def _make_weights():
    """Deterministic (3, 1, 3, 3) weights from expandLayer.__init__ (reference check only)."""
    k1 = jnp.array([[-3.0, -10.0, -3.0],
                    [0.0, 0.0, 0.0],
                    [3.0, 10.0, 3.0]], dtype=jnp.float32)
    k2 = jnp.array([[-3.0, 0.0, 3.0],
                    [-10.0, 0.0, 10.0],
                    [-3.0, 0.0, 3.0]], dtype=jnp.float32)
    emp = jnp.array([[0.0, 0.0, 0.0],
                     [0.0, 1.0, 0.0],
                     [0.0, 0.0, 0.0]], dtype=jnp.float32)
    return jnp.stack([k1, k2, emp], axis=0)[:, None, :, :]


def _expand_kernel(H, W):
    P = H * W

    def kernel(x_ref, o_ref):
        # x_ref: (TB, P) lane-flattened images; o_ref: (TB, 3*P).
        x = x_ref[...].astype(jnp.float32)
        lane = jax.lax.broadcasted_iota(jnp.int32, x.shape, dimension=1)
        col = lane % W
        zero = jnp.zeros_like(x)

        # Edge masks implementing the implicit 1-pixel zero halo.
        m_left = col > 0            # j-1 exists
        m_right = col < (W - 1)     # j+1 exists
        m_up = lane >= W            # i-1 exists
        m_down = lane < (P - W)     # i+1 exists

        # Zero-padded neighbour fetches in flattened p = i*W + j coordinates.
        # pltpu.roll matches np.roll (result[p] = y[(p - shift) % P]); all
        # shifts are lane rotations -> XLU slot, keeping the VPU free.
        def left(y):    # y[i, j-1]
            return jnp.where(m_left, pltpu.roll(y, 1, axis=1), zero)

        def right(y):   # y[i, j+1]
            return jnp.where(m_right, pltpu.roll(y, P - 1, axis=1), zero)

        def up(y):      # y[i-1, j]
            return jnp.where(m_up, pltpu.roll(y, W, axis=1), zero)

        def down(y):    # y[i+1, j]
            return jnp.where(m_down, pltpu.roll(y, P - W, axis=1), zero)

        # Separable forms of the fixed kernels (zero taps skipped):
        #   k1: out1[i,j] = g[i+1,j] - g[i-1,j],  g = 3*(x[.,j-1]+x[.,j+1]) + 10*x
        #   k2: out2[i,j] = h[i,j+1] - h[i,j-1],  h = 3*(x[i-1,.]+x[i+1,.]) + 10*x
        #   k3: identity (copy of x)
        g = 3.0 * (left(x) + right(x)) + 10.0 * x
        h = 3.0 * (up(x) + down(x)) + 10.0 * x
        out1 = down(g) - up(g)
        out2 = right(h) - left(h)

        dt = o_ref.dtype
        o_ref[:, 0 * P:1 * P] = out1.astype(dt)
        o_ref[:, 1 * P:2 * P] = out2.astype(dt)
        o_ref[:, 2 * P:3 * P] = x.astype(dt)

    return kernel


def _choose_block_batch(N, P, itemsize):
    """Images per grid step: sublane-aligned, ~1 MiB blocks, >=2 grid steps when possible."""
    row_bytes = 4 * P * itemsize          # 1 input row + 3 output rows per image
    tb = max(1, (1 << 20) // max(row_bytes, 1))
    if N <= 8 or tb >= N:
        return N                          # single full-batch block (full dim => always legal)
    tb = min(tb, max(8, N // 2))          # keep >=2 grid steps so both v7x TensorCores get work
    return max(8, (tb // 8) * 8)          # multiple of 8 sublanes, well under VMEM limits


@jax.jit
def expand_layer_forward(x):
    """x: (N, 1, H, W) -> (N, 3, H, W); same semantics as expandLayer.forward."""
    N, C, H, W = x.shape
    assert C == 1, "expandLayer conv expects a single input channel"
    OC = 3
    P = H * W

    x_flat = x.reshape(N, P)              # free row-major reshape (no data movement)
    TB = _choose_block_batch(N, P, x.dtype.itemsize)
    grid = (pl.cdiv(N, TB),)

    out_flat = pl.pallas_call(
        _expand_kernel(H, W),
        out_shape=jax.ShapeDtypeStruct((N, OC * P), x.dtype),
        grid=grid,
        in_specs=[pl.BlockSpec((TB, P), lambda n: (n, 0))],
        out_specs=pl.BlockSpec((TB, OC * P), lambda n: (n, 0)),
        compiler_params=pltpu.CompilerParams(
            dimension_semantics=("parallel",),
            vmem_limit_bytes=32 * 1024 * 1024,
        ),
    )(x_flat)
    return out_flat.reshape(N, OC, H, W)  # free row-major reshape


if __name__ == "__main__":
    key = jax.random.PRNGKey(0)
    N, C, H, W = 2, 1, 16, 16
    x = jax.random.normal(key, (N, C, H, W), dtype=jnp.float32)

    out = expand_layer_forward(x)
    out = jax.block_until_ready(out)

    # Reference check (same semantics as F.conv2d(x, weights, padding=1, stride=1)).
    ref = jax.lax.conv_general_dilated(
        x, _make_weights(), window_strides=(1, 1), padding=((1, 1), (1, 1)),
        dimension_numbers=("NCHW", "OIHW", "NCHW"))
    assert out.shape == (N, 3, H, W)
    assert jnp.allclose(out, ref, atol=1e-5, rtol=1e-5)

    print("KERNEL_OK")
</pallas_src>

<mosaic_0001>
module attributes {stable_mosaic.version = 11 : i64} {
  func.func @kernel(%arg0: i32, %arg1: memref<2x256xf32, #tpu.memory_space<vmem>>, %arg2: memref<2x768xf32, #tpu.memory_space<vmem>>) attributes {dimension_semantics = [#tpu.dimension_semantics<parallel>], iteration_bounds = array<i64: 1>, scalar_prefetch = 0 : i64, scratch_operands = 0 : i64, tpu.core_type = #tpu.core_type<tc>, window_params = [{transform_indices = @transform_0, window_bounds = array<i64: 2, 256>}, {transform_indices = @transform_1, window_bounds = array<i64: 2, 768>}]} {
    %c0 = arith.constant 0 : index
    %c0_0 = arith.constant 0 : index
    %0 = vector.load %arg1[%c0, %c0_0] : memref<2x256xf32, #tpu.memory_space<vmem>>, vector<2x256xf32>
    %1 = tpu.iota {dimensions = array<i32: 1>} : vector<2x256xi32>
    %c16_i32 = arith.constant 16 : i32
    %c0_i32 = arith.constant 0 : i32
    %2 = arith.cmpi eq, %c16_i32, %c0_i32 : i32
    %c1_i32 = arith.constant 1 : i32
    %3 = arith.select %2, %c1_i32, %c16_i32 : i32
    %4 = vector.broadcast %3 : i32 to vector<2x256xi32>
    %5 = arith.remsi %1, %4 : vector<2x256xi32>
    %c0_i32_1 = arith.constant 0 : i32
    %6 = vector.broadcast %c0_i32_1 : i32 to vector<2x256xi32>
    %7 = arith.cmpi ne, %5, %6 : vector<2x256xi32>
    %c0_i32_2 = arith.constant 0 : i32
    %8 = vector.broadcast %c0_i32_2 : i32 to vector<2x256xi32>
    %9 = arith.cmpi slt, %5, %8 : vector<2x256xi32>
    %c0_i32_3 = arith.constant 0 : i32
    %10 = arith.cmpi slt, %3, %c0_i32_3 : i32
    %11 = vector.broadcast %10 : i1 to vector<2x256xi1>
    %12 = vector.broadcast %11 : vector<2x256xi1> to vector<2x256xi1>
    %13 = arith.xori %9, %12 : vector<2x256xi1>
    %14 = arith.andi %13, %7 : vector<2x256xi1>
    %15 = vector.broadcast %3 : i32 to vector<2x256xi32>
    %16 = arith.addi %5, %15 : vector<2x256xi32>
    %17 = arith.select %14, %16, %5 : vector<2x256xi1>, vector<2x256xi32>
    %cst = arith.constant 0.000000e+00 : f32
    %18 = vector.broadcast %cst : f32 to vector<2x256xf32>
    %c0_i32_4 = arith.constant 0 : i32
    %19 = vector.broadcast %c0_i32_4 : i32 to vector<2x256xi32>
    %20 = arith.cmpi sgt, %17, %19 : vector<2x256xi32>
    %c15_i32 = arith.constant 15 : i32
    %21 = vector.broadcast %c15_i32 : i32 to vector<2x256xi32>
    %22 = arith.cmpi slt, %17, %21 : vector<2x256xi32>
    %c16_i32_5 = arith.constant 16 : i32
    %23 = vector.broadcast %c16_i32_5 : i32 to vector<2x256xi32>
    %24 = arith.cmpi sge, %1, %23 : vector<2x256xi32>
    %c240_i32 = arith.constant 240 : i32
    %25 = vector.broadcast %c240_i32 : i32 to vector<2x256xi32>
    %26 = arith.cmpi slt, %1, %25 : vector<2x256xi32>
    %c1_i32_6 = arith.constant 1 : i32
    %27 = tpu.dynamic_rotate %0 by %c1_i32_6 dim 1 : vector<2x256xf32>, i32 -> vector<2x256xf32>
    %28 = arith.select %20, %27, %18 : vector<2x256xi1>, vector<2x256xf32>
    %c255_i32 = arith.constant 255 : i32
    %29 = tpu.dynamic_rotate %0 by %c255_i32 dim 1 : vector<2x256xf32>, i32 -> vector<2x256xf32>
    %30 = arith.select %22, %29, %18 : vector<2x256xi1>, vector<2x256xf32>
    %31 = arith.addf %28, %30 : vector<2x256xf32>
    %cst_7 = arith.constant 3.000000e+00 : f32
    %32 = vector.broadcast %cst_7 : f32 to vector<2x256xf32>
    %33 = arith.mulf %32, %31 : vector<2x256xf32>
    %cst_8 = arith.constant 1.000000e+01 : f32
    %34 = vector.broadcast %cst_8 : f32 to vector<2x256xf32>
    %35 = arith.mulf %34, %0 : vector<2x256xf32>
    %36 = arith.addf %33, %35 : vector<2x256xf32>
    %c16_i32_9 = arith.constant 16 : i32
    %37 = tpu.dynamic_rotate %0 by %c16_i32_9 dim 1 : vector<2x256xf32>, i32 -> vector<2x256xf32>
    %38 = arith.select %24, %37, %18 : vector<2x256xi1>, vector<2x256xf32>
    %c240_i32_10 = arith.constant 240 : i32
    %39 = tpu.dynamic_rotate %0 by %c240_i32_10 dim 1 : vector<2x256xf32>, i32 -> vector<2x256xf32>
    %40 = arith.select %26, %39, %18 : vector<2x256xi1>, vector<2x256xf32>
    %41 = arith.addf %38, %40 : vector<2x256xf32>
    %cst_11 = arith.constant 3.000000e+00 : f32
    %42 = vector.broadcast %cst_11 : f32 to vector<2x256xf32>
    %43 = arith.mulf %42, %41 : vector<2x256xf32>
    %cst_12 = arith.constant 1.000000e+01 : f32
    %44 = vector.broadcast %cst_12 : f32 to vector<2x256xf32>
    %45 = arith.mulf %44, %0 : vector<2x256xf32>
    %46 = arith.addf %43, %45 : vector<2x256xf32>
    %c240_i32_13 = arith.constant 240 : i32
    %47 = tpu.dynamic_rotate %36 by %c240_i32_13 dim 1 : vector<2x256xf32>, i32 -> vector<2x256xf32>
    %48 = arith.select %26, %47, %18 : vector<2x256xi1>, vector<2x256xf32>
    %c16_i32_14 = arith.constant 16 : i32
    %49 = tpu.dynamic_rotate %36 by %c16_i32_14 dim 1 : vector<2x256xf32>, i32 -> vector<2x256xf32>
    %50 = arith.select %24, %49, %18 : vector<2x256xi1>, vector<2x256xf32>
    %51 = arith.subf %48, %50 : vector<2x256xf32>
    %c255_i32_15 = arith.constant 255 : i32
    %52 = tpu.dynamic_rotate %46 by %c255_i32_15 dim 1 : vector<2x256xf32>, i32 -> vector<2x256xf32>
    %53 = arith.select %22, %52, %18 : vector<2x256xi1>, vector<2x256xf32>
    %c1_i32_16 = arith.constant 1 : i32
    %54 = tpu.dynamic_rotate %46 by %c1_i32_16 dim 1 : vector<2x256xf32>, i32 -> vector<2x256xf32>
    %55 = arith.select %20, %54, %18 : vector<2x256xi1>, vector<2x256xf32>
    %56 = arith.subf %53, %55 : vector<2x256xf32>
    %c0_17 = arith.constant 0 : index
    %c0_18 = arith.constant 0 : index
    %57 = vector.load %arg2[%c0_17, %c0_18] : memref<2x768xf32, #tpu.memory_space<vmem>>, vector<2x256xf32>
    tpu.vector_store %arg2[%c0_17, %c0_18], %51 {strides = array<i32>} : memref<2x768xf32, #tpu.memory_space<vmem>>, vector<2x256xf32>,
    %c0_19 = arith.constant 0 : index
    %c256 = arith.constant 256 : index
    %58 = vector.load %arg2[%c0_19, %c256] : memref<2x768xf32, #tpu.memory_space<vmem>>, vector<2x256xf32>
    tpu.vector_store %arg2[%c0_19, %c256], %56 {strides = array<i32>} : memref<2x768xf32, #tpu.memory_space<vmem>>, vector<2x256xf32>,
    %c0_20 = arith.constant 0 : index
    %c512 = arith.constant 512 : index
    %59 = vector.load %arg2[%c0_20, %c512] : memref<2x768xf32, #tpu.memory_space<vmem>>, vector<2x256xf32>
    tpu.vector_store %arg2[%c0_20, %c512], %0 {strides = array<i32>} : memref<2x768xf32, #tpu.memory_space<vmem>>, vector<2x256xf32>,
    return
  }
  func.func @transform_0(%arg0: i32) -> (i32, i32) {
    %c0_i32 = arith.constant 0 : i32
    %c0_i32_0 = arith.constant 0 : i32
    return %arg0, %c0_i32 : i32, i32
  }
  func.func @transform_1(%arg0: i32) -> (i32, i32) {
    %c0_i32 = arith.constant 0 : i32
    %c0_i32_0 = arith.constant 0 : i32
    return %arg0, %c0_i32 : i32, i32
  }
}

</mosaic_0001>

<llo_original>
// kernel: expand_layer_forward.1
$region0: #{expand_layer_forward.1}
  #allocation0 [shape = 'u32[]', space=smem, size = 0x4, offset = 0x4, fixed_abs, tag = 'smem constant byte address 0x4 - core index']
  #allocation1 [shape = 'u32[144,128]{1,0:T(1,128)}', space=vmem, size = 0x12000, scoped, tag = 'internal scratch']
  %s0 = inlined_call_operand.vmem [shape: f32[2,256], index: 0, kind: input, shape index: {}]
  %s1 = inlined_call_operand.vmem [shape: f32[2,768], index: 1, kind: output, shape index: {}]
  %s2 = sld [smem:[#allocation0]]
  $region14: #{expand_layer_forward.1} parent=0
    _
  %s4 = ssub.s32 1, %s2
  %s5 = scalar_select 0, %s4, %s2
  // Predicated region
  $region2: #{expand_layer_forward.1} parent=0 // pred_check
    _
  $region3: #{expand_layer_forward.1} parent=0 // pred_check_branch
    %7 = sbr.rel (0) target = $region5
  $region4: #{expand_layer_forward.1} parent=0 // pred_region
    _
  $region5: #{expand_layer_forward.1} parent=0 // pred_fallthru
    _
  %v8 = vld [vmem:[%s0] sm:$0xf]
  %v9 = vlaneseq
  %v10 = vand.u32 %v9, 127
  %v11 = vadd.s32 %v10, 128
  %vm12 = vcmp.lt.s32.totalorder %v10, 0
  %v13 = vsub.s32 0, %v10
  %v14 = vsel %vm12, %v13, %v10
  %v15 = vshrl.u32 %v14, 4
  %v16 = vand.u32 %v14, 15
  %v17 = vsub.s32 0, %v16
  %v18 = vsel %vm12, %v17, %v16
  %vm19 = vcmp.lt.s32.totalorder %v11, 0
  %v20 = vsub.s32 0, %v11
  %v21 = vsel %vm19, %v20, %v11
  %v22 = vshrl.u32 %v21, 4
  %v23 = vand.u32 %v21, 15
  %v24 = vsub.s32 0, %v23
  %v25 = vsel %vm19, %v24, %v23
  %vm26 = vcmp.ne.s32.totalorder %v18, 0
  %vm27 = vcmp.ne.s32.totalorder %v25, 0
  %vm28 = vcmp.lt.s32.totalorder %v18, 0
  %vm29 = vcmp.lt.s32.totalorder %v25, 0
  %vm30 = vmand %vm28, %vm26
  %vm31 = vmand %vm29, %vm27
  %v32 = vadd.s32 %v18, 16
  %v33 = vadd.s32 %v25, 16
  %v34 = vsel %vm30, %v32, %v18
  %v35 = vsel %vm31, %v33, %v25
  %vm36 = vcmp.gt.s32.totalorder %v34, 0
  %vm37 = vcmp.gt.s32.totalorder %v35, 0
  %vm38 = vcmp.lt.s32.totalorder %v34, 15
  %vm39 = vcmp.lt.s32.totalorder %v35, 15
  %vm40 = vcmp.ge.s32.totalorder %v10, 16
  %vm41 = vcmp.ge.s32.totalorder %v11, 16
  %vm42 = vcmp.lt.s32.totalorder %v10, 240
  %vm43 = vcmp.lt.s32.totalorder %v11, 240
  %v46 = vunpack.c.l.s4 1983009808
  %v47 = vunpack.c.0.s8 %v46
  %v48 = vlaneseq
  %v49 = vshrl.u32 %v48, 7
  %v50 = vsub.s32 %v47, %v49
  %v51 = vrot.slane %v8, %v50
  %v52 = vcombine.high %v51, %v51
  %55 = vrot.lane.b32.xlu0 %v51, 1
  %v56 = vpop.permute.xlu0 %55
  %57 = vrot.lane.b32.xlu0 %v52, 1
  %v58 = vpop.permute.xlu0 %57
  %vm59 = vcmp.lt.s32.totalorder %v10, 1
  %v60 = vsel %vm59, %v56, %v58
  %v61 = vsel %vm59, %v58, %v56
  %v62 = vsel %vm36, %v61, 0.0
  %v63 = vsel %vm37, %v60, 0.0
  %64 = vrot.lane.b32.xlu0 %v51, 127
  %v65 = vpop.permute.xlu0 %64
  %66 = vrot.lane.b32.xlu0 %v52, 127
  %v67 = vpop.permute.xlu0 %66
  %vm68 = vcmp.lt.s32.totalorder %v10, 127
  %v69 = vsel %vm68, %v65, %v67
  %v70 = vsel %vm68, %v67, %v65
  %v71 = vsel %vm38, %v69, 0.0
  %v72 = vsel %vm39, %v70, 0.0
  %v73 = vadd.f32 %v62, %v71
  %v74 = vadd.f32 %v63, %v72
  %v75 = vmul.f32 %v73, 3.0
  %v76 = vmul.f32 %v74, 3.0
  %v77 = vmul.f32 %v8, 10.0
  %v80 = vunpack.c.l.s4 1983009808
  %v81 = vunpack.c.0.s8 %v80
  %v82 = vlaneseq
  %v83 = vshrl.u32 %v82, 7
  %v84 = vsub.s32 %v81, %v83
  %v85 = vrot.slane %v77, %v84
  %v86 = vcombine.high %v85, %v85
  %v89 = vadd.f32 %v75, %v85
  %v90 = vadd.f32 %v76, %v86
  %91 = vrot.lane.b32.xlu0 %v51, 16
  %v92 = vpop.permute.xlu0 %91
  %93 = vrot.lane.b32.xlu0 %v52, 16
  %v94 = vpop.permute.xlu0 %93
  %vm95 = vcmp.lt.s32.totalorder %v10, 16
  %v96 = vsel %vm95, %v92, %v94
  %v97 = vsel %vm95, %v94, %v92
  %v98 = vsel %vm40, %v97, 0.0
  %v99 = vsel %vm41, %v96, 0.0
  %100 = vrot.lane.b32.xlu0 %v51, 112
  %v101 = vpop.permute.xlu0 %100
  %102 = vrot.lane.b32.xlu0 %v52, 112
  %v103 = vpop.permute.xlu0 %102
  %vm104 = vcmp.lt.s32.totalorder %v10, 112
  %v105 = vsel %vm104, %v101, %v103
  %v106 = vsel %vm104, %v103, %v101
  %v107 = vsel %vm42, %v105, 0.0
  %v108 = vsel %vm43, %v106, 0.0
  %v109 = vadd.f32 %v98, %v107
  %v110 = vadd.f32 %v99, %v108
  %v111 = vmul.f32 %v109, 3.0
  %v112 = vmul.f32 %v110, 3.0
  %v113 = vadd.f32 %v111, %v85
  %v114 = vadd.f32 %v112, %v86
  %115 = vrot.lane.b32.xlu0 %v89, 112
  %v116 = vpop.permute.xlu0 %115
  %117 = vrot.lane.b32.xlu0 %v90, 112
  %v118 = vpop.permute.xlu0 %117
  %v119 = vsel %vm104, %v116, %v118
  %v120 = vsel %vm104, %v118, %v116
  %v121 = vsel %vm42, %v119, 0.0
  %v122 = vsel %vm43, %v120, 0.0
  %123 = vrot.lane.b32.xlu0 %v89, 16
  %v124 = vpop.permute.xlu0 %123
  %125 = vrot.lane.b32.xlu0 %v90, 16
  %v126 = vpop.permute.xlu0 %125
  %v127 = vsel %vm95, %v124, %v126
  %v128 = vsel %vm95, %v126, %v124
  %v129 = vsel %vm40, %v128, 0.0
  %v130 = vsel %vm41, %v127, 0.0
  %v131 = vsub.f32 %v121, %v129
  %v132 = vsub.f32 %v122, %v130
  %133 = vrot.lane.b32.xlu0 %v113, 127
  %v134 = vpop.permute.xlu0 %133
  %135 = vrot.lane.b32.xlu0 %v114, 127
  %v136 = vpop.permute.xlu0 %135
  %v137 = vsel %vm68, %v134, %v136
  %v138 = vsel %vm68, %v136, %v134
  %v139 = vsel %vm38, %v137, 0.0
  %v140 = vsel %vm39, %v138, 0.0
  %141 = vrot.lane.b32.xlu0 %v113, 1
  %v142 = vpop.permute.xlu0 %141
  %143 = vrot.lane.b32.xlu0 %v114, 1
  %v144 = vpop.permute.xlu0 %143
  %v145 = vsel %vm59, %v142, %v144
  %v146 = vsel %vm59, %v144, %v142
  %v147 = vsel %vm36, %v146, 0.0
  %v148 = vsel %vm37, %v145, 0.0
  %v149 = vsub.f32 %v139, %v147
  %v150 = vsub.f32 %v140, %v148
  %v153 = vcombine.low %v131, %v132
  %v155 = vunpack.c.l.s4 1983009808
  %v156 = vunpack.c.0.s8 %v155
  %v157 = vlaneseq
  %v158 = vshrl.u32 %v157, 7
  %v159 = vsub.s32 %v156, %v158
  %v160 = vrot.slane %v153, %v159
  %162 = vst [vmem:[%s1] sm:$0xf] %v160
  %v165 = vcombine.low %v149, %v150
  %v167 = vunpack.c.l.s4 1983009808
  %v168 = vunpack.c.0.s8 %v167
  %v169 = vlaneseq
  %v170 = vshrl.u32 %v169, 7
  %v171 = vsub.s32 %v168, %v170
  %v172 = vrot.slane %v165, %v171
  %174 = vst [vmem:[%s1 + $0x4] sm:$0xf] %v172
  %175 = vst [vmem:[%s1 + $0x8] sm:$0xf] %v8
  // Predicated region
  $region6: #{expand_layer_forward.1} parent=0 // pred_check
    _
  $region7: #{expand_layer_forward.1} parent=0 // pred_check_branch
    %177 = sbr.rel (0) target = $region9
  $region8: #{expand_layer_forward.1} parent=0 // pred_region
    _
  $region9: #{expand_layer_forward.1} parent=0 // pred_fallthru
    _
  // Predicated region
  $region10: #{expand_layer_forward.1} parent=0 // pred_check
    _
  $region11: #{expand_layer_forward.1} parent=0 // pred_check_branch
    %179 = sbr.rel (0) target = $region13
  $region12: #{expand_layer_forward.1} parent=0 // pred_region
    _
  $region13: #{expand_layer_forward.1} parent=0 // pred_fallthru
    _

</llo_original>
